<compile_context>
chip_gen: v5e
topology: v5e:2x2
jax: 0.10.0
libtpu: 0.0.40
codegen_flags: <defaults>
</compile_context>

<pallas_src>
import functools

import jax
import jax.numpy as jnp
from jax.experimental import pallas as pl
from jax.experimental.pallas import tpu as pltpu

VMEM_LIMIT = 32 * 1024 * 1024  # explicit scoped-VMEM limit (safe on v5e/v6e/v7x)


def _pick_tile_m(m, target=1024):
    """Largest row-tile <= target that divides m and is a multiple of 8.

    Falls back to the full extent (block == full array dim, always legal)."""
    if m <= target:
        return m
    start = target - (target % 8)
    for tm in range(start, 7, -8):
        if m % tm == 0:
            return tm
    return m


# ----------------------------------------------------------------------------
# Pallas kernels
# ----------------------------------------------------------------------------


def _conv1x1_bnstats_kernel(x_ref, w_ref, h_ref, sum_ref, m2_ref):
    # 1x1 conv == per-pixel channel matmul (bf16 operands, f32 accumulation).
    # Emits h in bf16 (halves the HBM write; it is re-read by K3 which casts
    # to bf16 for the MXU anyway) and per-tile BN1 partials in f32:
    # tile sum and tile-centered sum of squares (stable variance).
    h = jnp.dot(x_ref[...].astype(jnp.bfloat16), w_ref[...],
                preferred_element_type=jnp.float32)
    h_ref[...] = h.astype(jnp.bfloat16)
    s = jnp.sum(h, axis=0, keepdims=True)
    mu = s * (1.0 / h.shape[0])
    d = h - mu
    sum_ref[0] = s
    m2_ref[0] = jnp.sum(d * d, axis=0, keepdims=True)


def _affine_kernel(x_ref, scale_ref, shift_ref, o_ref):
    # y = x * scale + shift   (BatchNorm normalize + gamma/beta, folded).
    # Input is bf16, math and output are f32.
    o_ref[...] = (x_ref[...].astype(jnp.float32) * scale_ref[...]
                  + shift_ref[...]).astype(o_ref.dtype)


def _abf_tail_kernel(*refs, H, W, fuse):
    # Fused per-image kernel:
    #   x   = BN1(h)                                  (f32 math on bf16 h)
    #   x   = x*sigmoid(l0) + y*sigmoid(l1)           (attention, if fuse)
    #   res = x (stored bf16)
    #   out = conv3x3(x) as 9 shifted-tap MXU matmuls (pltpu.roll + iota mask,
    #         VMEM scratch f32 accumulator, no im2col blowup in HBM)
    #   + per-image BN2 partials (sum, centered M2)
    if fuse:
        (h_ref, sc_ref, sh_ref, y_ref, wa_ref, b_ref, w_ref,
         out_ref, xmid_ref, sum_ref, m2_ref, acc_ref) = refs
    else:
        (h_ref, sc_ref, sh_ref, w_ref,
         out_ref, xmid_ref, sum_ref, m2_ref, acc_ref) = refs

    HW = H * W

    # BN1 affine (scale/shift precomputed from K1 stats in the wrapper).
    x = h_ref[0].astype(jnp.float32) * sc_ref[...] + sh_ref[...]

    if fuse:
        # z = sigmoid([x, y] @ W_att + b); x = x*z0 + y*z1.
        # The (rows, C) @ (C, 2) matmul is VPU multiplies + lane reductions
        # (2 output lanes would waste the MXU); it hides under the 9 matmuls.
        y = y_ref[0].astype(jnp.float32)
        wa = wa_ref[...]                    # (4, C): [wx->z0, wx->z1, wy->z0, wy->z1]
        b = b_ref[...]                      # (1, 2)
        l0 = (jnp.sum(x * wa[0:1, :], axis=-1, keepdims=True)
              + jnp.sum(y * wa[2:3, :], axis=-1, keepdims=True) + b[0:1, 0:1])
        l1 = (jnp.sum(x * wa[1:2, :], axis=-1, keepdims=True)
              + jnp.sum(y * wa[3:4, :], axis=-1, keepdims=True) + b[0:1, 1:2])
        x = x * jax.nn.sigmoid(l0) + y * jax.nn.sigmoid(l1)

    x_bf = x.astype(jnp.bfloat16)
    xmid_ref[0] = x_bf                      # res output, bf16

    cmid = x_bf.shape[-1]
    # Per-row pixel coordinates for the 3x3 padding masks, built in-kernel
    # (replaces the old lane-padded (9, HW, 1) mask tensor shipped from HBM).
    row = jax.lax.broadcasted_iota(jnp.int32, (HW, cmid), 0)
    hi = row // W
    wi = row - hi * W

    # Centre tap (always valid) initializes the VMEM scratch accumulator.
    acc_ref[...] = jnp.dot(x_bf, w_ref[4], preferred_element_type=jnp.float32)
    for dy in range(3):
        for dx in range(3):
            if dy == 1 and dx == 1:
                continue
            t = dy * 3 + dx
            off = (dy - 1) * W + (dx - 1)
            # row m of `shifted` <- row (m + off) mod HW of x.
            # TODO(synk): roll kept in f32 for lowering safety; a bf16 roll
            #             would halve the XLU bytes moved per tap.
            shifted = pltpu.roll(x, (-off) % HW, 0)
            valid = ((hi + (dy - 1) >= 0) & (hi + (dy - 1) < H)
                     & (wi + (dx - 1) >= 0) & (wi + (dx - 1) < W))
            tap = jnp.where(valid, shifted, 0.0).astype(jnp.bfloat16)
            acc_ref[...] += jnp.dot(tap, w_ref[t],
                                    preferred_element_type=jnp.float32)

    acc = acc_ref[...]
    # TODO(synk): cout < 128 so this store is lane-masked; a lane-dense packed
    #             store would need an in-kernel relayout.
    out_ref[0] = acc.astype(jnp.bfloat16)
    s = jnp.sum(acc, axis=0, keepdims=True)
    mu = s * (1.0 / HW)
    d = acc - mu
    sum_ref[0] = s
    m2_ref[0] = jnp.sum(d * d, axis=0, keepdims=True)


# ----------------------------------------------------------------------------
# Pallas wrappers
# ----------------------------------------------------------------------------


def conv1x1_bnstats(x_flat, w_bf16):
    """x_flat: (M, Cin) f32, w: (Cin, Cmid) bf16 ->
       (h bf16 (M, Cmid), per-tile sums (T,1,Cmid), per-tile M2 (T,1,Cmid))."""
    M, cin = x_flat.shape
    cmid = w_bf16.shape[1]
    tm = _pick_tile_m(M)
    nt = M // tm
    return pl.pallas_call(
        _conv1x1_bnstats_kernel,
        out_shape=(
            jax.ShapeDtypeStruct((M, cmid), jnp.bfloat16),
            jax.ShapeDtypeStruct((nt, 1, cmid), jnp.float32),
            jax.ShapeDtypeStruct((nt, 1, cmid), jnp.float32),
        ),
        grid=(nt,),
        in_specs=[
            pl.BlockSpec((tm, cin), lambda i: (i, 0)),
            pl.BlockSpec((cin, cmid), lambda i: (0, 0)),
        ],
        out_specs=(
            pl.BlockSpec((tm, cmid), lambda i: (i, 0)),
            pl.BlockSpec((1, 1, cmid), lambda i: (i, 0, 0)),
            pl.BlockSpec((1, 1, cmid), lambda i: (i, 0, 0)),
        ),
        compiler_params=pltpu.CompilerParams(
            dimension_semantics=("parallel",),   # per-tile partials -> independent
            vmem_limit_bytes=VMEM_LIMIT,
        ),
    )(x_flat, w_bf16)


def abf_tail(h_flat, scale1, shift1, w_taps_bf16, N, H, W,
             y_up=None, w_att=None, b_att=None):
    """Fused BN1-affine(+attention) + conv3x3 + BN2 partial stats.

    h_flat: (M, Cmid) bf16.  Returns (out_img bf16 (N,HW,Cout),
    x_mid bf16 (N,HW,Cmid), per-image sum/M2 (N,1,Cout))."""
    HW = H * W
    cmid = h_flat.shape[-1]
    cout = w_taps_bf16.shape[-1]
    fuse = w_att is not None
    h_img = h_flat.reshape(N, HW, cmid)

    in_specs = [
        pl.BlockSpec((1, HW, cmid), lambda n: (n, 0, 0)),
        pl.BlockSpec((1, cmid), lambda n: (0, 0)),
        pl.BlockSpec((1, cmid), lambda n: (0, 0)),
    ]
    operands = [h_img, scale1, shift1]
    if fuse:
        in_specs += [
            pl.BlockSpec((1, HW, cmid), lambda n: (n, 0, 0)),
            pl.BlockSpec((4, cmid), lambda n: (0, 0)),
            pl.BlockSpec((1, 2), lambda n: (0, 0)),
        ]
        operands += [y_up.reshape(N, HW, cmid).astype(jnp.bfloat16), w_att, b_att]
    in_specs.append(pl.BlockSpec((9, cmid, cout), lambda n: (0, 0, 0)))
    operands.append(w_taps_bf16)

    kernel = functools.partial(_abf_tail_kernel, H=H, W=W, fuse=fuse)
    return pl.pallas_call(
        kernel,
        out_shape=(
            jax.ShapeDtypeStruct((N, HW, cout), jnp.bfloat16),
            jax.ShapeDtypeStruct((N, HW, cmid), jnp.bfloat16),
            jax.ShapeDtypeStruct((N, 1, cout), jnp.float32),
            jax.ShapeDtypeStruct((N, 1, cout), jnp.float32),
        ),
        grid=(N,),
        in_specs=in_specs,
        out_specs=(
            pl.BlockSpec((1, HW, cout), lambda n: (n, 0, 0)),
            pl.BlockSpec((1, HW, cmid), lambda n: (n, 0, 0)),
            pl.BlockSpec((1, 1, cout), lambda n: (n, 0, 0)),
            pl.BlockSpec((1, 1, cout), lambda n: (n, 0, 0)),
        ),
        scratch_shapes=[pltpu.VMEM((HW, cout), jnp.float32)],
        compiler_params=pltpu.CompilerParams(
            dimension_semantics=("parallel",),   # per-image partials -> independent
            vmem_limit_bytes=VMEM_LIMIT,
        ),
    )(*operands)


def bn_affine_lanedense(x_flat_bf16, scale, shift):
    """BN affine y = x*scale + shift on a lane-dense repacked layout.

    cout (16/32/64) < 128 would lower to masked partial stores; a contiguous
    reshape (M, c) -> (M/r, r*c) with r = 128//c plus tiled scale/shift gives
    full-lane stores.  Output is f32 (the returned feature)."""
    M, c = x_flat_bf16.shape
    r = 1
    if c < 128 and 128 % c == 0:
        r = 128 // c
        while r > 1 and M % r != 0:
            r //= 2
    Mr, cr = M // r, c * r
    x2 = x_flat_bf16.reshape(Mr, cr)
    scale2 = jnp.tile(scale, (1, r))
    shift2 = jnp.tile(shift, (1, r))
    tm = _pick_tile_m(Mr)
    out = pl.pallas_call(
        _affine_kernel,
        out_shape=jax.ShapeDtypeStruct((Mr, cr), jnp.float32),
        grid=(Mr // tm,),
        in_specs=[
            pl.BlockSpec((tm, cr), lambda i: (i, 0)),
            pl.BlockSpec((1, cr), lambda i: (0, 0)),
            pl.BlockSpec((1, cr), lambda i: (0, 0)),
        ],
        out_specs=pl.BlockSpec((tm, cr), lambda i: (i, 0)),
        compiler_params=pltpu.CompilerParams(
            dimension_semantics=("parallel",),
            vmem_limit_bytes=VMEM_LIMIT,
        ),
    )(x2, scale2, shift2)
    return out.reshape(M, c)


# ----------------------------------------------------------------------------
# ABF module (forward)
# ----------------------------------------------------------------------------


def combine_bn_stats(psum, pm2, tile_count, gamma, beta, eps=1e-5):
    """Combine equal-count per-tile (sum, centered-M2) partials into BN
    scale/shift (training mode: biased batch variance, Chan combination).

    TODO(synk): running_mean / running_var buffer updates are not implemented
                (pure forward with batch statistics; matches train-mode output)."""
    T = psum.shape[0]
    total = T * tile_count
    tile_mean = psum / tile_count                       # (T, 1, C)
    mean = jnp.sum(psum, axis=0) / total                # (1, C)
    m2 = jnp.sum(pm2, axis=0) + tile_count * jnp.sum(
        (tile_mean - mean[None, :, :]) ** 2, axis=0)    # (1, C)
    var = m2 / total
    scale = gamma * jax.lax.rsqrt(var + eps)
    shift = beta - mean * scale
    return scale, shift


def nearest_upsample(y, out_hw):
    """F.interpolate(y, shape, mode='nearest') for NHWC."""
    H, W = out_hw
    yh, yw = y.shape[1], y.shape[2]
    ri = (jnp.arange(H) * yh) // H
    ci = (jnp.arange(W) * yw) // W
    return y[:, ri][:, :, ci]


def abf_forward(params, x, y=None, shape=None):
    """x: (N,H,W,Cin).  Returns (out (N,H,W,Cout) f32, res (N,H,W,Cmid) bf16)."""
    N, H, W, cin = x.shape
    cmid = params["w1"].shape[1]
    M = N * H * W

    # conv_first: 1x1 conv (no bias) + BatchNorm1 batch stats, fused.
    h, s1, m21 = conv1x1_bnstats(x.reshape(M, cin), params["w1"])
    scale1, shift1 = combine_bn_stats(s1, m21, M // s1.shape[0],
                                      params["bn1_gamma"], params["bn1_beta"])

    y_up = None
    if params["w_att"] is not None:
        y_up = nearest_upsample(y, shape if shape is not None else (H, W))

    # Fused BN1-affine(+attention) + conv_last 3x3 conv + BatchNorm2 stats.
    out_img, x_mid, s2, m22 = abf_tail(
        h, scale1, shift1, params["w2"], N, H, W,
        y_up=y_up, w_att=params["w_att"], b_att=params["b_att"])

    cout = out_img.shape[-1]
    scale2, shift2 = combine_bn_stats(s2, m22, H * W,
                                      params["bn2_gamma"], params["bn2_beta"])
    out = bn_affine_lanedense(out_img.reshape(M, cout),
                              scale2, shift2).reshape(N, H, W, cout)
    return out, x_mid.reshape(N, H, W, cmid)


# ----------------------------------------------------------------------------
# Parameter init (deterministic, matches module __init__ shapes)
# ----------------------------------------------------------------------------


def init_abf_params(key, in_channel, out_channel, mid_channel, is_fuse):
    k1, k2, k3, k4 = jax.random.split(key, 4)
    # kaiming_uniform_(a=1): bound = sqrt(3 / fan_in)
    b1 = (3.0 / in_channel) ** 0.5
    w1 = jax.random.uniform(k1, (in_channel, mid_channel), jnp.float32, -b1, b1)
    b2 = (3.0 / (mid_channel * 9)) ** 0.5
    w2 = jax.random.uniform(k2, (3, 3, mid_channel, out_channel), jnp.float32, -b2, b2)
    p = dict(
        w1=w1.astype(jnp.bfloat16),                                  # MXU operand
        w2=w2.reshape(9, mid_channel, out_channel).astype(jnp.bfloat16),
        bn1_gamma=jnp.ones((1, mid_channel), jnp.float32),
        bn1_beta=jnp.zeros((1, mid_channel), jnp.float32),
        bn2_gamma=jnp.ones((1, out_channel), jnp.float32),
        bn2_beta=jnp.zeros((1, out_channel), jnp.float32),
        w_att=None,
        b_att=None,
    )
    if is_fuse:
        fan_in = 2 * mid_channel
        ba = 1.0 / (fan_in ** 0.5)
        # rows: [wx->z0, wx->z1, wy->z0, wy->z1]
        p["w_att"] = jax.random.uniform(k3, (4, mid_channel), jnp.float32, -ba, ba)
        p["b_att"] = jax.random.uniform(k4, (1, 2), jnp.float32, -ba, ba)
    return p


# ----------------------------------------------------------------------------
# Synthetic teacher / student nets (glue).
# TODO(synk): t_net / s_net are external backbones in the original module;
#             replaced here with simple deterministic feature extractors.
# ----------------------------------------------------------------------------


def init_stub_net(key, channels, num_classes=10):
    keys = jax.random.split(key, len(channels) + 1)
    projs = [
        0.1 * jax.random.normal(keys[i], (3, c), jnp.float32)
        for i, c in enumerate(channels)
    ]
    head = 0.1 * jax.random.normal(keys[-1], (channels[-1], num_classes), jnp.float32)
    return {"projs": projs, "head": head}


def stub_net_forward(p, x):
    """x: (N, H, W, 3) -> {'output': logits, 'feat': [shallow .. deep]}"""
    feats = []
    cur = x
    for proj in p["projs"]:
        feats.append(jnp.einsum("nhwc,cd->nhwd", cur, proj))
        N, H, W, C = cur.shape
        cur = cur.reshape(N, H // 2, 2, W // 2, 2, C).mean(axis=(2, 4))
    logits = feats[-1].mean(axis=(1, 2)) @ p["head"]
    return {"output": logits, "feat": feats}


# ----------------------------------------------------------------------------
# RFDDistiller forward
# ----------------------------------------------------------------------------

T_CHANNELS = (16, 32, 64)  # teacher distill channels (shallow -> deep)
S_CHANNELS = (8, 16, 32)   # student distill channels (shallow -> deep)
MID_CHANNEL = 256          # student is not a ResNet -> 256


def init_rfd_params(key):
    kt, ks, kabf = jax.random.split(key, 3)
    t_params = init_stub_net(kt, list(T_CHANNELS))
    s_params = init_stub_net(ks, list(S_CHANNELS))
    rev_t = list(reversed(T_CHANNELS))
    rev_s = list(reversed(S_CHANNELS))
    abf_keys = jax.random.split(kabf, len(rev_t))
    abf_params = [
        init_abf_params(abf_keys[i], rev_s[i], rev_t[i], MID_CHANNEL, i != 0)
        for i in range(len(rev_t))
    ]
    return {"t": t_params, "s": s_params, "abf": abf_params}


def rfd_forward(params, x):
    t_out = stub_net_forward(params["t"], x)
    s_out = stub_net_forward(params["s"], x)
    t_feats = t_out["feat"]
    s_feats = s_out["feat"]
    L = len(s_feats)
    assert L == len(t_feats) == len(params["abf"])

    res_features = None
    res_s_feats = []
    for idx in range(L):
        s_feat = s_feats[L - idx - 1]  # deep -> shallow
        h, w = s_feat.shape[1], s_feat.shape[2]
        if idx == 0:
            out_features, res_features = abf_forward(
                params["abf"][idx], s_feat, shape=(h, w)
            )
        else:
            out_features, res_features = abf_forward(
                params["abf"][idx], s_feat, y=res_features, shape=(h, w)
            )
        res_s_feats.append(out_features)
    res_s_feats.reverse()
    return {"output": s_out["output"], "t_feat": t_feats, "s_feat": res_s_feats}


# ----------------------------------------------------------------------------


if __name__ == "__main__":
    key = jax.random.PRNGKey(0)
    kx, kp = jax.random.split(key)
    # Input image, NHWC (torch would see (2, 3, 16, 16) NCHW).
    x = jax.random.normal(kx, (2, 16, 16, 3), jnp.float32)
    params = init_rfd_params(kp)

    out = rfd_forward(params, x)
    out = jax.tree_util.tree_map(lambda a: jax.block_until_ready(a), out)

    # sanity: transformed student features match teacher feature shapes
    for tf, sf in zip(out["t_feat"], out["s_feat"]):
        assert tf.shape == sf.shape, (tf.shape, sf.shape)
    assert out["output"].shape == (2, 10)

    print("KERNEL_OK")
</pallas_src>

<mosaic_0001>
module attributes {stable_mosaic.version = 11 : i64} {
  func.func @_conv1x1_bnstats_kernel(%arg0: i32, %arg1: memref<32x32xf32, #tpu.memory_space<vmem>>, %arg2: memref<32x256xbf16, #tpu.memory_space<vmem>>, %arg3: memref<32x256xbf16, #tpu.memory_space<vmem>>, %arg4: memref<1x1x256xf32, #tpu.memory_space<vmem>>, %arg5: memref<1x1x256xf32, #tpu.memory_space<vmem>>) attributes {dimension_semantics = [#tpu.dimension_semantics<parallel>], iteration_bounds = array<i64: 1>, scalar_prefetch = 0 : i64, scratch_operands = 0 : i64, tpu.core_type = #tpu.core_type<tc>, window_params = [{transform_indices = @transform_0, window_bounds = array<i64: 32, 32>}, {pipeline_mode = #tpu.pipeline_mode<synchronous>, transform_indices = @transform_1, window_bounds = array<i64: 32, 256>}, {transform_indices = @transform_2, window_bounds = array<i64: 32, 256>}, {transform_indices = @transform_3, window_bounds = array<i64: 1, 1, 256>}, {transform_indices = @transform_4, window_bounds = array<i64: 1, 1, 256>}]} {
    %c0 = arith.constant 0 : index
    %c0_0 = arith.constant 0 : index
    %0 = vector.load %arg1[%c0, %c0_0] : memref<32x32xf32, #tpu.memory_space<vmem>>, vector<32x32xf32>
    %1 = arith.truncf %0 : vector<32x32xf32> to vector<32x32xbf16>
    %c0_1 = arith.constant 0 : index
    %c0_2 = arith.constant 0 : index
    %2 = vector.load %arg2[%c0_1, %c0_2] : memref<32x256xbf16, #tpu.memory_space<vmem>>, vector<32x256xbf16>
    %cst = arith.constant dense<0.000000e+00> : vector<32x256xf32>
    %3 = tpu.matmul %1, %2, %cst {dimension_numbers = #tpu.dot_dimension_numbers<[1], [0], [0], [1], [0, 0, 1, 1], [], []>} : vector<32x32xbf16>, vector<32x256xbf16>, vector<32x256xf32> -> vector<32x256xf32>
    %4 = arith.truncf %3 : vector<32x256xf32> to vector<32x256xbf16>
    %c0_3 = arith.constant 0 : index
    %c0_4 = arith.constant 0 : index
    %5 = vector.load %arg3[%c0_3, %c0_4] : memref<32x256xbf16, #tpu.memory_space<vmem>>, vector<32x256xbf16>
    tpu.vector_store %arg3[%c0_3, %c0_4], %4 {strides = array<i32>} : memref<32x256xbf16, #tpu.memory_space<vmem>>, vector<32x256xbf16>,
    %cst_5 = arith.constant dense<0.000000e+00> : vector<256xf32>
    %6 = vector.multi_reduction <add>, %3, %cst_5 [0] : vector<32x256xf32> to vector<256xf32>
    %7 = vector.shape_cast %6 : vector<256xf32> to vector<1x256xf32>
    %cst_6 = arith.constant 3.125000e-02 : f32
    %8 = vector.broadcast %cst_6 : f32 to vector<1x256xf32>
    %9 = arith.mulf %7, %8 : vector<1x256xf32>
    %10 = vector.broadcast %9 : vector<1x256xf32> to vector<32x256xf32>
    %11 = arith.subf %3, %10 : vector<32x256xf32>
    %c0_7 = arith.constant 0 : index
    %c0_8 = arith.constant 0 : index
    %c0_9 = arith.constant 0 : index
    %12 = vector.load %arg4[%c0_7, %c0_8, %c0_9] : memref<1x1x256xf32, #tpu.memory_space<vmem>>, vector<1x1x256xf32>
    %13 = vector.shape_cast %12 : vector<1x1x256xf32> to vector<1x256xf32>
    %14 = vector.shape_cast %7 : vector<1x256xf32> to vector<1x1x256xf32>
    tpu.vector_store %arg4[%c0_7, %c0_8, %c0_9], %14 {strides = array<i32>} : memref<1x1x256xf32, #tpu.memory_space<vmem>>, vector<1x1x256xf32>,
    %15 = arith.mulf %11, %11 : vector<32x256xf32>
    %cst_10 = arith.constant dense<0.000000e+00> : vector<256xf32>
    %16 = vector.multi_reduction <add>, %15, %cst_10 [0] : vector<32x256xf32> to vector<256xf32>
    %17 = vector.shape_cast %16 : vector<256xf32> to vector<1x256xf32>
    %c0_11 = arith.constant 0 : index
    %c0_12 = arith.constant 0 : index
    %c0_13 = arith.constant 0 : index
    %18 = vector.load %arg5[%c0_11, %c0_12, %c0_13] : memref<1x1x256xf32, #tpu.memory_space<vmem>>, vector<1x1x256xf32>
    %19 = vector.shape_cast %18 : vector<1x1x256xf32> to vector<1x256xf32>
    %20 = vector.shape_cast %17 : vector<1x256xf32> to vector<1x1x256xf32>
    tpu.vector_store %arg5[%c0_11, %c0_12, %c0_13], %20 {strides = array<i32>} : memref<1x1x256xf32, #tpu.memory_space<vmem>>, vector<1x1x256xf32>,
    return
  }
  func.func @transform_0(%arg0: i32) -> (i32, i32) {
    %c0_i32 = arith.constant 0 : i32
    %c0_i32_0 = arith.constant 0 : i32
    return %arg0, %c0_i32 : i32, i32
  }
  func.func @transform_1(%arg0: i32) -> (i32, i32) {
    %c0_i32 = arith.constant 0 : i32
    %c0_i32_0 = arith.constant 0 : i32
    %c0_i32_1 = arith.constant 0 : i32
    return %c0_i32, %c0_i32_0 : i32, i32
  }
  func.func @transform_2(%arg0: i32) -> (i32, i32) {
    %c0_i32 = arith.constant 0 : i32
    %c0_i32_0 = arith.constant 0 : i32
    return %arg0, %c0_i32 : i32, i32
  }
  func.func @transform_3(%arg0: i32) -> (i32, i32, i32) {
    %c0_i32 = arith.constant 0 : i32
    %c0_i32_0 = arith.constant 0 : i32
    %c0_i32_1 = arith.constant 0 : i32
    return %arg0, %c0_i32, %c0_i32_0 : i32, i32, i32
  }
  func.func @transform_4(%arg0: i32) -> (i32, i32, i32) {
    %c0_i32 = arith.constant 0 : i32
    %c0_i32_0 = arith.constant 0 : i32
    %c0_i32_1 = arith.constant 0 : i32
    return %arg0, %c0_i32, %c0_i32_0 : i32, i32, i32
  }
}

</mosaic_0001>

<llo_original>
// kernel: tpu_custom_call.1
$region0: #{tpu_custom_call.1}
  #allocation0 [shape = 'u32[]', space=smem, size = 0x4, offset = 0x4, fixed_abs, tag = 'smem constant byte address 0x4 - core index']
  #allocation1 [shape = 'u32[72,128]{1,0:T(1,128)}', space=vmem, size = 0x9000, scoped, tag = 'internal scratch']
  %s0 = inlined_call_operand.hbm [shape: f32[32,32], index: 0, kind: input, shape index: {}]
  %s1 = inlined_call_operand.hbm [shape: bf16[32,256], index: 1, kind: input, shape index: {}]
  %s2 = inlined_call_operand.hbm [shape: bf16[32,256], index: 2, kind: output, shape index: {0}]
  %s3 = inlined_call_operand.hbm [shape: f32[1,1,256], index: 3, kind: output, shape index: {1}]
  %s4 = inlined_call_operand.hbm [shape: f32[1,1,256], index: 4, kind: output, shape index: {2}]
  %5 = xla_tuple %s2, %s3, %s4
  %s6 = sld [smem:[#allocation0]]
  $region42: #{tpu_custom_call.1} parent=0
    _
  %s8 = ssub.s32 1, %s6
  %s9 = scalar_select 0, %s8, %s6
  $region1: #{tpu_custom_call.1} parent=0
    #allocation2 [shape = 'u8[16384]{0}', space=vmem, size = 0x4000, scoped, tag = 'input window, operand 0, single buffered']
    #allocation3 [shape = 's32[1]{0}', space=sflag, size = 0x4, scoped, tag = 'scoped memory for tpu_custom_call.1']
    #allocation4 [shape = 's32[1]{0}', space=sflag, size = 0x4, scoped, tag = 'scoped memory for tpu_custom_call.1']
    #allocation5 [shape = 'u8[16384]{0}', space=vmem, size = 0x4000, scoped, tag = 'input window, operand 1, single buffered']
    #allocation6 [shape = 's32[1]{0}', space=sflag, size = 0x4, scoped, tag = 'scoped memory for tpu_custom_call.1']
    #allocation7 [shape = 'u8[16384]{0}', space=vmem, size = 0x4000, scoped, tag = 'output window, operand 0, single buffered']
    #allocation8 [shape = 'u8[1024]{0}', space=vmem, size = 0x400, scoped, tag = 'output window, operand 1, single buffered']
    #allocation9 [shape = 's32[1]{0}', space=sflag, size = 0x4, scoped, tag = 'scoped memory for tpu_custom_call.1']
    #allocation10 [shape = 'u8[1024]{0}', space=vmem, size = 0x400, scoped, tag = 'output window, operand 2, single buffered']
    %10 = vsyncpa [#allocation3], 0
    %11 = vsyncpa [#allocation6], 0
    %12 = vsyncpa [#allocation4], 0
    %13 = vsyncpa [#allocation9], 0
    // Predicated region
    $region2: #{tpu_custom_call.1} parent=1 // pred_check
      _
    $region3: #{tpu_custom_call.1} parent=1 // pred_check_branch
      %15 = sbr.rel (0) target = $region5
    $region4: #{tpu_custom_call.1} parent=1 // pred_region
      %17 = vsyncadd [#allocation3], 0
      %s18 = sshll.u32 %s0, 4
      %s19 = int_to_ptr.hbm [resolvable:$true] %s18
      %s20 = sshll.u32 [#allocation2], 4
      %s21 = int_to_ptr.vmem [resolvable:$true] %s20
      %26 = dma.hbm_to_vmem [thread:$0]  %s19, 512, %s21, [#allocation3], 128, 128, 8
    $region5: #{tpu_custom_call.1} parent=1 // pred_fallthru
      _
    // Predicated region
    $region6: #{tpu_custom_call.1} parent=1 // pred_check
      _
    $region7: #{tpu_custom_call.1} parent=1 // pred_check_branch
      %28 = sbr.rel (0) target = $region9
    $region8: #{tpu_custom_call.1} parent=1 // pred_region
      %30 = vsyncadd [#allocation6], 0
      %s31 = sshll.u32 %s1, 4
      %s32 = int_to_ptr.hbm [resolvable:$true] %s31
      %s33 = sshll.u32 [#allocation5], 4
      %s34 = int_to_ptr.vmem [resolvable:$true] %s33
      %39 = dma.hbm_to_vmem [thread:$0]  %s32, 512, %s34, [#allocation6], 128, 128, 8
    $region9: #{tpu_custom_call.1} parent=1 // pred_fallthru
      _
    // Predicated region
    $region10: #{tpu_custom_call.1} parent=1 // pred_check
      _
    $region11: #{tpu_custom_call.1} parent=1 // pred_check_branch
      %41 = sbr.rel (0) target = $region13
    $region12: #{tpu_custom_call.1} parent=1 // pred_region
      %43 = dma.done [#allocation3], 512
    $region13: #{tpu_custom_call.1} parent=1 // pred_fallthru
      _
    // Predicated region
    $region14: #{tpu_custom_call.1} parent=1 // pred_check
      _
    $region15: #{tpu_custom_call.1} parent=1 // pred_check_branch
      %45 = sbr.rel (0) target = $region17
    $region16: #{tpu_custom_call.1} parent=1 // pred_region
      %47 = dma.done [#allocation6], 512
    $region17: #{tpu_custom_call.1} parent=1 // pred_fallthru
      _
    %v49 = vld [vmem:[#allocation2] sm:$0xff]
    %v50 = vld [vmem:[#allocation2 + $0x8] sm:$0xff]
    %v51 = vld [vmem:[#allocation2 + $0x10] sm:$0xff]
    %v52 = vld [vmem:[#allocation2 + $0x18] sm:$0xff]
    %v53 = vpack.c.bf16 %v50, %v49
    %v54 = vpack.c.bf16 %v52, %v51
    %v55 = vld [vmem:[#allocation5] sm:$0xff]
    %v56 = vld [vmem:[#allocation5 + $0x8] sm:$0xff]
    %v57 = vld [vmem:[#allocation5 + $0x10] sm:$0xff]
    %v58 = vld [vmem:[#allocation5 + $0x18] sm:$0xff]
    %v63 = vunpack.c.l.b16 %v55
    %v64 = vunpack.c.h.b16 %v55
    %v65 = vunpack.c.l.b16 %v56
    %v66 = vunpack.c.h.b16 %v56
    %v67 = vunpack.c.l.b16 %v57
    %v68 = vunpack.c.h.b16 %v57
    %v69 = vunpack.c.l.b16 %v58
    %v70 = vunpack.c.h.b16 %v58
    %v71 = vpack.c.b16 %v65, %v63
    %v72 = vpack.c.b16 %v66, %v64
    %v73 = vpack.c.b16 %v69, %v67
    %v74 = vpack.c.b16 %v70, %v68
    %vm79 = vcmask 261120
    %v81 = vsel %vm79, %v53, 0
    %v84 = vsel %vm79, %v54, 0
    %86 = vmatpush.bf16.msra.mxu0 0
    %87 = vmatpush.bf16.msra.mxu0 0
    %88 = vmatpush.bf16.msra.mxu0 0
    %89 = vmatpush.bf16.msra.mxu0 0
    %90 = vmatpush.bf16.msra.mxu0 0
    %91 = vmatpush.bf16.msra.mxu0 0
    %92 = vmatpush.bf16.msra.mxu0 %v73
    %93 = vmatpush.bf16.msra.mxu0 %v71
    %94 = vmatmul.bf16.gmra.mxu0 %v81
    %v95 = vpop.f32.mrf.mxu0
    %v96 = vadd.f32 0.0, %v95
    %v97 = vpop.f32.mrf.mxu0
    %v98 = vadd.f32 0.0, %v97
    %99 = vmatmul.bf16.gmra.mxu0 %v84
    %v100 = vpop.f32.mrf.mxu0
    %v101 = vadd.f32 0.0, %v100
    %v102 = vpop.f32.mrf.mxu0
    %v103 = vadd.f32 0.0, %v102
    %104 = vdwg.mxu0
    %105 = vmatpush.bf16.msra.mxu0 0
    %106 = vmatpush.bf16.msra.mxu0 0
    %107 = vmatpush.bf16.msra.mxu0 0
    %108 = vmatpush.bf16.msra.mxu0 0
    %109 = vmatpush.bf16.msra.mxu0 0
    %110 = vmatpush.bf16.msra.mxu0 0
    %111 = vmatpush.bf16.msra.mxu0 %v74
    %112 = vmatpush.bf16.msra.mxu0 %v72
    %113 = vmatmul.bf16.gmra.mxu0 %v81
    %v114 = vpop.f32.mrf.mxu0
    %v115 = vadd.f32 0.0, %v114
    %v116 = vpop.f32.mrf.mxu0
    %v117 = vadd.f32 0.0, %v116
    %118 = vmatmul.bf16.gmra.mxu0 %v84
    %v119 = vpop.f32.mrf.mxu0
    %v120 = vadd.f32 0.0, %v119
    %v121 = vpop.f32.mrf.mxu0
    %v122 = vadd.f32 0.0, %v121
    %123 = vdwg.mxu0
    %v124 = vpack.c.bf16 %v115, %v96
    %v125 = vpack.c.bf16 %v117, %v98
    %v126 = vpack.c.bf16 %v120, %v101
    %v127 = vpack.c.bf16 %v122, %v103
    %128 = vst [vmem:[#allocation7] sm:$0xff] %v124
    %129 = vst [vmem:[#allocation7 + $0x8] sm:$0xff] %v125
    %130 = vst [vmem:[#allocation7 + $0x10] sm:$0xff] %v126
    %131 = vst [vmem:[#allocation7 + $0x18] sm:$0xff] %v127
    %v132 = vadd.f32 %v96, %v98
    %v133 = vadd.f32 %v132, %v101
    %v134 = vadd.f32 %v133, %v103
    %v135 = vrot.slane %v134, 4
    %v136 = vadd.f32 %v134, %v135
    %v137 = vrot.slane %v136, 2
    %v138 = vadd.f32 %v136, %v137
    %v139 = vrot.slane %v138, 1
    %v140 = vadd.f32 %v138, %v139
    %v141 = vadd.f32 %v115, %v117
    %v142 = vadd.f32 %v141, %v120
    %v143 = vadd.f32 %v142, %v122
    %v144 = vrot.slane %v143, 4
    %v145 = vadd.f32 %v143, %v144
    %v146 = vrot.slane %v145, 2
    %v147 = vadd.f32 %v145, %v146
    %v148 = vrot.slane %v147, 1
    %v149 = vadd.f32 %v147, %v148
    %v150 = vmul.f32 %v140, 0.03125
    %v151 = vmul.f32 %v149, 0.03125
    %v152 = vsub.f32 %v96, %v150
    %v153 = vsub.f32 %v115, %v151
    %v154 = vsub.f32 %v98, %v150
    %v155 = vsub.f32 %v117, %v151
    %v156 = vsub.f32 %v101, %v150
    %v157 = vsub.f32 %v120, %v151
    %v158 = vsub.f32 %v103, %v150
    %v159 = vsub.f32 %v122, %v151
    %v162 = vrot.slane %v149, 7
    %vm163 = vcmask 1040384
    %v164 = vsel %vm163, %v140, %v162
    %v166 = vlaneseq
    %vm167 = vcmp.ge.s32.totalorder %v166, 0
    %vm168 = vcmp.lt.s32.totalorder %v166, 256
    %vm169 = vmand %vm167, %vm168
    %170 = vst.msk [vmem:[#allocation8] sm:$0x3] %vm169, %v164
    %v171 = vmul.f32 %v152, %v152
    %v172 = vmul.f32 %v153, %v153
    %v173 = vmul.f32 %v154, %v154
    %v174 = vmul.f32 %v155, %v155
    %v175 = vmul.f32 %v156, %v156
    %v176 = vmul.f32 %v157, %v157
    %v177 = vmul.f32 %v158, %v158
    %v178 = vmul.f32 %v159, %v159
    %v179 = vadd.f32 %v171, %v173
    %v180 = vadd.f32 %v179, %v175
    %v181 = vadd.f32 %v180, %v177
    %v182 = vrot.slane %v181, 4
    %v183 = vadd.f32 %v181, %v182
    %v184 = vrot.slane %v183, 2
    %v185 = vadd.f32 %v183, %v184
    %v186 = vrot.slane %v185, 1
    %v187 = vadd.f32 %v185, %v186
    %v188 = vadd.f32 %v172, %v174
    %v189 = vadd.f32 %v188, %v176
    %v190 = vadd.f32 %v189, %v178
    %v191 = vrot.slane %v190, 4
    %v192 = vadd.f32 %v190, %v191
    %v193 = vrot.slane %v192, 2
    %v194 = vadd.f32 %v192, %v193
    %v195 = vrot.slane %v194, 1
    %v196 = vadd.f32 %v194, %v195
    %v199 = vrot.slane %v196, 7
    %v200 = vsel %vm163, %v187, %v199
    %202 = vst.msk [vmem:[#allocation10] sm:$0x3] %vm169, %v200
    // Predicated region
    $region18: #{tpu_custom_call.1} parent=1 // pred_check
      _
    $region19: #{tpu_custom_call.1} parent=1 // pred_check_branch
      %204 = sbr.rel (0) target = $region21
    $region20: #{tpu_custom_call.1} parent=1 // pred_region
      %206 = vsyncadd [#allocation4], 0
      %s207 = sshll.u32 [#allocation7], 4
      %s208 = int_to_ptr.vmem [resolvable:$true] %s207
      %s209 = sshll.u32 %s2, 4
      %s210 = int_to_ptr.hbm [resolvable:$true] %s209
      %215 = dma.vmem_to_hbm [thread:$0]  %s208, 512, %s210, [#allocation4], 128, 128, 8
    $region21: #{tpu_custom_call.1} parent=1 // pred_fallthru
      _
    // Predicated region
    $region22: #{tpu_custom_call.1} parent=1 // pred_check
      _
    $region23: #{tpu_custom_call.1} parent=1 // pred_check_branch
      %217 = sbr.rel (0) target = $region25
    $region24: #{tpu_custom_call.1} parent=1 // pred_region
      %219 = vsyncadd [#allocation9], 0
      %s221 = sshll.u32 [#allocation8], 4
      %s222 = int_to_ptr.vmem [resolvable:$true] %s221
      %s223 = sshll.u32 %s3, 4
      %s224 = int_to_ptr.hbm [resolvable:$true] %s223
      %226 = dma.vmem_to_hbm [thread:$0]  %s222, 32, %s224, [#allocation9]
    $region25: #{tpu_custom_call.1} parent=1 // pred_fallthru
      _
    // Predicated region
    $region26: #{tpu_custom_call.1} parent=1 // pred_check
      _
    $region27: #{tpu_custom_call.1} parent=1 // pred_check_branch
      %228 = sbr.rel (0) target = $region29
    $region28: #{tpu_custom_call.1} parent=1 // pred_region
      %230 = vsyncadd [#allocation9], 0
      %s232 = sshll.u32 [#allocation10], 4
      %s233 = int_to_ptr.vmem [resolvable:$true] %s232
      %s234 = sshll.u32 %s4, 4
      %s235 = int_to_ptr.hbm [resolvable:$true] %s234
      %237 = dma.vmem_to_hbm [thread:$0]  %s233, 32, %s235, [#allocation9]
    $region29: #{tpu_custom_call.1} parent=1 // pred_fallthru
      _
    // Predicated region
    $region30: #{tpu_custom_call.1} parent=1 // pred_check
      _
    $region31: #{tpu_custom_call.1} parent=1 // pred_check_branch
      %239 = sbr.rel (0) target = $region33
    $region32: #{tpu_custom_call.1} parent=1 // pred_region
      %241 = dma.done [#allocation4], 512
    $region33: #{tpu_custom_call.1} parent=1 // pred_fallthru
      _
    // Predicated region
    $region34: #{tpu_custom_call.1} parent=1 // pred_check
      _
    $region35: #{tpu_custom_call.1} parent=1 // pred_check_branch
      %243 = sbr.rel (0) target = $region37
    $region36: #{tpu_custom_call.1} parent=1 // pred_region
      %245 = dma.done [#allocation9], 32
    $region37: #{tpu_custom_call.1} parent=1 // pred_fallthru
      _
    // Predicated region
    $region38: #{tpu_custom_call.1} parent=1 // pred_check
      _
    $region39: #{tpu_custom_call.1} parent=1 // pred_check_branch
      %247 = sbr.rel (0) target = $region41
    $region40: #{tpu_custom_call.1} parent=1 // pred_region
      %249 = dma.done [#allocation9], 32
    $region41: #{tpu_custom_call.1} parent=1 // pred_fallthru
      _
    %250 = vsyncpa [#allocation3], 1
    %251 = vsyncpa [#allocation6], 1
    %252 = vsyncpa [#allocation4], 1
    %253 = vsyncpa [#allocation9], 1

</llo_original>
